<compile_context>
chip_gen: v7x
topology: tpu7x:2x2x1
jax: 0.10.0
libtpu: 0.0.40
codegen_flags: <defaults>
</compile_context>

<pallas_src>
import functools

import jax
import jax.numpy as jnp
import numpy as np
from jax.experimental import pallas as pl
from jax.experimental.pallas import tpu as pltpu


# Tap offsets (row, col) for the 3x3 shortcut conv and the 7x7 SA conv, in the
# same order as the corresponding weight layouts below.
OFFS3 = tuple((ki - 1, kj - 1) for ki in range(3) for kj in range(3))
OFFS7 = tuple((di - 3, dj - 3) for di in range(7) for dj in range(7))


# ---------------------------------------------------------------------------
# pltpu.roll direction probe (run once per backend/device kind, cached): the
# shift-based convolutions stay correct regardless of the rotate convention.
# ---------------------------------------------------------------------------
def _roll_probe_kernel(x_ref, o_ref):
    o_ref[...] = pltpu.roll(x_ref[...], 1, 1)


_ROLL_CACHE = {}


def _roll_moves_up():
    """True iff pltpu.roll(x, s, ax) moves element i to index i+s (jnp.roll-like)."""
    try:
        key = (jax.default_backend(), jax.devices()[0].device_kind)
    except Exception:  # pragma: no cover - defensive
        key = ("unknown", "unknown")
    if key not in _ROLL_CACHE:
        x = jnp.tile(jnp.arange(128, dtype=jnp.float32)[None, :], (8, 1))
        y = pl.pallas_call(
            _roll_probe_kernel,
            out_shape=jax.ShapeDtypeStruct((8, 128), jnp.float32),
        )(x)
        _ROLL_CACHE[key] = bool(np.asarray(y)[0, 0] == 127.0)
    return _ROLL_CACHE[key]


def _lane_roll(x, s, n, roll_up):
    """Returns r with r[..., p] = x[..., (p + s) % n]  (s is a static Python int)."""
    if s % n == 0:
        return x
    amt = (-s) % n if roll_up else s % n
    return pltpu.roll(x, amt, 1)


# ---------------------------------------------------------------------------
# Fused MaskNet kernel.  One grid step handles NB batch elements, lane-merged
# into a (C, NB*HW) slab (lane-dense, channel-major).
# ---------------------------------------------------------------------------
def _masknet_kernel(x_ref, w1t_ref, w2t_ref, wm7_ref, mask3_ref, w3f_ref,
                    bnb_ref, woutT_ref, bout_ref, o_ref, *, W, roll_up):
    NB, C, HW = x_ref.shape
    L = NB * HW                                        # merged lane width

    # Lane-merge the NB batch elements handled by this grid step -> (C, NB*HW).
    if NB > 1:
        xs = jnp.concatenate([x_ref[b] for b in range(NB)], axis=1)
    else:
        xs = x_ref[0]

    # ------------- channel attention (CBAM CA), fused avg/max MLP -------------
    avgs, maxs = [], []
    for b in range(NB):
        seg = xs[:, b * HW:(b + 1) * HW]
        avgs.append(jnp.mean(seg, axis=1, keepdims=True))        # (C, 1)
        maxs.append(jnp.max(seg, axis=1, keepdims=True))         # (C, 1)
    stats = jnp.concatenate(avgs + maxs, axis=1)                  # (C, 2*NB)
    h = jnp.maximum(
        jnp.dot(w1t_ref[...], stats, preferred_element_type=jnp.float32), 0.0)
    o2 = jnp.dot(w2t_ref[...], h, preferred_element_type=jnp.float32)  # (C, 2*NB)
    ca = jax.nn.sigmoid(o2[:, :NB] + o2[:, NB:])                  # (C, NB)
    xs = jnp.concatenate(
        [xs[:, b * HW:(b + 1) * HW] * ca[:, b:b + 1] for b in range(NB)], axis=1)

    # ------------------- spatial attention (CBAM SA) --------------------------
    m_avg = jnp.mean(xs, axis=0, keepdims=True)                   # (1, L)
    m_max = jnp.max(xs, axis=0, keepdims=True)                    # (1, L)
    m2 = jnp.concatenate([m_avg, m_max], axis=0)                  # (2, L)
    # Sublane-pack all batches so every 7x7 tap (roll + FMA) covers every batch:
    # rows = [mean_b0, max_b0, mean_b1, max_b1, ...] -> (2*NB, HW).
    if NB > 1:
        slab = jnp.concatenate(
            [m2[:, b * HW:(b + 1) * HW] for b in range(NB)], axis=0)
    else:
        slab = m2
    R = 2 * NB

    # 7x7 conv as 49 lane-rolls; per-tap kernel weights are folded host-side into
    # the tap-major, sublane-dense border masks wm7 (49*R, HW).  Four independent
    # partial accumulators break the serial VALU dependence chain.
    accs = [jnp.zeros((R, HW), jnp.float32) for _ in range(4)]
    for t, (oi, oj) in enumerate(OFFS7):
        r = _lane_roll(slab, oi * W + oj, HW, roll_up)
        accs[t % 4] = accs[t % 4] + wm7_ref[pl.ds(R * t, R), :] * r
    sconv = (accs[0] + accs[1]) + (accs[2] + accs[3])             # (R, HW)
    sas = [jax.nn.sigmoid(jnp.sum(sconv[2 * b:2 * b + 2, :], axis=0, keepdims=True))
           for b in range(NB)]                                    # NB x (1, HW)
    sa = jnp.concatenate(sas, axis=1) if NB > 1 else sas[0]       # (1, L)
    xs = xs * sa

    # ----- shortcut conv 3x3 (C -> 32): bf16 im2col + one MXU matmul -----------
    # Flat wraparound across L (including across batch boundaries) lands only on
    # positions whose spatial source is out of the HxW image, which mask3 zeroes.
    xs_bf = xs.astype(jnp.bfloat16)
    slabs = []
    for t, (oi, oj) in enumerate(OFFS3):
        if oi == 0 and oj == 0:
            slabs.append(xs_bf)                                   # center tap: no roll/mask
        else:
            r = _lane_roll(xs, oi * W + oj, L, roll_up)           # f32 roll
            slabs.append(r.astype(jnp.bfloat16) * mask3_ref[pl.ds(t, 1), :])
    patches = jnp.concatenate(slabs, axis=0)                      # (9C, L) bf16
    acc32 = jnp.dot(w3f_ref[...], patches,
                    preferred_element_type=jnp.float32)           # (32, L)

    # BatchNorm (eval): scale already folded into w3f; bias + ReLU here.
    y = jnp.maximum(acc32 + bnb_ref[...], 0.0)                    # (32, L)

    # ---------------- out conv 1x1 (32 -> Cout) + bias -------------------------
    out = jnp.dot(woutT_ref[...], y.astype(jnp.bfloat16),
                  preferred_element_type=jnp.float32) + bout_ref[...]   # (Cout, L)
    out = out.astype(o_ref.dtype)
    for b in range(NB):
        o_ref[b] = out[:, b * HW:(b + 1) * HW]


# ---------------------------------------------------------------------------
# Host-side parameter / mask preparation.
# ---------------------------------------------------------------------------
def _shift_masks(H, W, offsets):
    """mask[t, p] = 1.0 where the spatial shift offsets[t] keeps position p in-bounds."""
    p = np.arange(H * W)
    i, j = p // W, p % W
    rows = []
    for oi, oj in offsets:
        ok = (i + oi >= 0) & (i + oi < H) & (j + oj >= 0) & (j + oj < W)
        rows.append(ok.astype(np.float32))
    return np.stack(rows)                              # (T, H*W)


def _kernel_consts(params, H, W, NB):
    """Kernel-form constants (cached per (H,W,NB)): BN folded into the 3x3 weights,
    tap-major sublane-dense masks, bf16 MXU weights."""
    cache = params.setdefault("_kconsts_cache", {})
    key = (H, W, NB)
    if key in cache:
        return cache[key]
    HW = H * W
    C = params["w1"].shape[0]

    mask3 = _shift_masks(H, W, OFFS3)                  # (9, HW)
    mask7 = _shift_masks(H, W, OFFS7)                  # (49, HW)
    wsa49 = np.asarray(params["wsa"], np.float32).reshape(49, 2)      # [tap, {mean,max}]
    wm7 = wsa49[:, :, None] * mask7[:, None, :]        # (49, 2, HW): weight*mask folded
    wm7 = np.tile(wm7, (1, NB, 1)).reshape(49 * 2 * NB, HW)           # tap-major, dense

    bn_scale = np.asarray(params["bn_scale"], np.float32)
    w3 = np.asarray(params["w3"], np.float32)          # (9, C, 32) [tap, cin, cout]
    w3f = np.transpose(w3, (2, 0, 1)).reshape(32, 9 * C) * bn_scale[:, None]

    kc = dict(
        w1t=jnp.asarray(np.asarray(params["w1"], np.float32).T),          # (Cr, C)
        w2t=jnp.asarray(np.asarray(params["w2"], np.float32).T),          # (C, Cr)
        wm7=jnp.asarray(wm7, jnp.float32),                                # (98*NB, HW)
        mask3=jnp.asarray(np.tile(mask3, (1, NB)), jnp.bfloat16),         # (9, NB*HW)
        w3f=jnp.asarray(w3f, jnp.bfloat16),                               # (32, 9C)
        bn_bias_col=jnp.asarray(
            np.asarray(params["bn_bias"], np.float32).reshape(32, 1)),
        woutT=jnp.asarray(np.asarray(params["wout"], np.float32).T, jnp.bfloat16),
        bout_col=jnp.asarray(
            np.asarray(params["bout"], np.float32).reshape(-1, 1)),
    )
    cache[key] = kc
    return kc


def _batch_split(N):
    """(grid_steps, use_core_parallel): split the batch across TensorCores on
    multi-core chips (v7x); otherwise collapse the batch to a single grid step."""
    try:
        kind = jax.devices()[0].device_kind.lower()
    except Exception:  # pragma: no cover - defensive
        kind = ""
    if ("v7" in kind or "7x" in kind) and N > 1 and N % 2 == 0:
        return 2, True
    return 1, False


def masknet_forward(x_nchw, params):
    """Pallas MaskNet forward. Input/output are NCHW (PyTorch convention)."""
    N, C, H, W = x_nchw.shape
    HW = H * W
    Cout = params["wout"].shape[1]
    x_flat = x_nchw.reshape(N, C, HW)                  # free: same bytes as NCHW

    g_steps, core_parallel = _batch_split(N)

    def run(g, semantics):
        NB = N // g
        kp = _kernel_consts(params, H, W, NB)
        kernel = functools.partial(_masknet_kernel, W=W, roll_up=_roll_moves_up())
        return pl.pallas_call(
            kernel,
            out_shape=jax.ShapeDtypeStruct((N, Cout, HW), jnp.float32),
            grid=(g,),
            in_specs=[
                pl.BlockSpec((NB, C, HW), lambda i: (i, 0, 0)),
                pl.BlockSpec(kp["w1t"].shape, lambda i: (0, 0)),
                pl.BlockSpec(kp["w2t"].shape, lambda i: (0, 0)),
                pl.BlockSpec(kp["wm7"].shape, lambda i: (0, 0)),
                pl.BlockSpec(kp["mask3"].shape, lambda i: (0, 0)),
                pl.BlockSpec(kp["w3f"].shape, lambda i: (0, 0)),
                pl.BlockSpec(kp["bn_bias_col"].shape, lambda i: (0, 0)),
                pl.BlockSpec(kp["woutT"].shape, lambda i: (0, 0)),
                pl.BlockSpec(kp["bout_col"].shape, lambda i: (0, 0)),
            ],
            out_specs=pl.BlockSpec((NB, Cout, HW), lambda i: (i, 0, 0)),
            compiler_params=pltpu.CompilerParams(dimension_semantics=semantics),
        )(x_flat, kp["w1t"], kp["w2t"], kp["wm7"], kp["mask3"], kp["w3f"],
          kp["bn_bias_col"], kp["woutT"], kp["bout_col"])

    if core_parallel:
        try:
            out = run(g_steps, (pltpu.CORE_PARALLEL,))     # one batch element per TC
        except Exception:
            out = run(1, ("arbitrary",))                   # safe fallback
    else:
        out = run(1, ("arbitrary",))                       # single step: batch lane-merged

    # TODO(synk): for large H*W, add a spatial-tile grid axis (halo-aware masks,
    # per-tap accumulating matmuls instead of the im2col slab) to bound VMEM on
    # v7x (64 MiB) and keep the MXU contraction dim near a multiple of 256.
    return out.reshape(N, Cout, H, W)                  # free: same bytes


# ---------------------------------------------------------------------------
# Pure-JAX reference (NCHW) mirroring the PyTorch module semantics.
# ---------------------------------------------------------------------------
def masknet_reference(x, params):
    N, C, H, W = x.shape
    hp = jax.lax.Precision.HIGHEST
    # channel attention
    avg = jnp.mean(x, axis=(2, 3))
    mx = jnp.max(x, axis=(2, 3))

    def mlp(v):
        return jnp.maximum(v @ params["w1"], 0.0) @ params["w2"]

    ca = jax.nn.sigmoid(mlp(avg) + mlp(mx))
    x = x * ca[:, :, None, None]
    # spatial attention
    m_avg = jnp.mean(x, axis=1, keepdims=True)
    m_max = jnp.max(x, axis=1, keepdims=True)
    sa_in = jnp.concatenate([m_avg, m_max], axis=1)              # (N,2,H,W)
    wsa_oihw = jnp.transpose(params["wsa"], (2, 0, 1))[None]     # (1,2,7,7)
    sconv = jax.lax.conv_general_dilated(
        sa_in, wsa_oihw, (1, 1), ((3, 3), (3, 3)),
        dimension_numbers=("NCHW", "OIHW", "NCHW"), precision=hp)
    x = x * jax.nn.sigmoid(sconv)
    # shortcut conv 3x3 + BN + ReLU
    w3_oihw = jnp.transpose(params["w3"].reshape(3, 3, C, 32), (3, 2, 0, 1))
    y = jax.lax.conv_general_dilated(
        x, w3_oihw, (1, 1), ((1, 1), (1, 1)),
        dimension_numbers=("NCHW", "OIHW", "NCHW"), precision=hp)
    y = y * params["bn_scale"].reshape(1, 32, 1, 1) + params["bn_bias"].reshape(1, 32, 1, 1)
    y = jnp.maximum(y, 0.0)
    # out conv 1x1
    wout_oihw = jnp.transpose(params["wout"], (1, 0))[:, :, None, None]
    out = jax.lax.conv_general_dilated(
        y, wout_oihw, (1, 1), ((0, 0), (0, 0)),
        dimension_numbers=("NCHW", "OIHW", "NCHW"), precision=hp)
    return out + params["bout"].reshape(1, -1, 1, 1)


def make_params(C, Cout):
    key = jax.random.PRNGKey(0)
    ks = jax.random.split(key, 10)
    Cr = max(C // 8, 1)                                # CAreduction = 8
    w1 = 0.3 * jax.random.normal(ks[0], (C, Cr), jnp.float32)
    w2 = 0.3 * jax.random.normal(ks[1], (Cr, C), jnp.float32)
    wsa = 0.1 * jax.random.normal(ks[2], (7, 7, 2), jnp.float32)   # [kh, kw, in_ch]
    w3 = 0.2 * jax.random.normal(ks[3], (9, C, 32), jnp.float32)   # [tap, cin, cout]
    gamma = 1.0 + 0.1 * jax.random.normal(ks[4], (32,), jnp.float32)
    beta = 0.1 * jax.random.normal(ks[5], (32,), jnp.float32)
    rmean = 0.1 * jax.random.normal(ks[6], (32,), jnp.float32)
    rvar = 1.0 + 0.1 * jnp.abs(jax.random.normal(ks[7], (32,), jnp.float32))
    eps = 1e-5
    bn_scale = gamma / jnp.sqrt(rvar + eps)
    bn_bias = beta - rmean * bn_scale
    wout = 0.2 * jax.random.normal(ks[8], (32, Cout), jnp.float32)
    bout = 0.1 * jax.random.normal(ks[9], (Cout,), jnp.float32)
    return {"w1": w1, "w2": w2, "wsa": wsa, "w3": w3,
            "bn_scale": bn_scale, "bn_bias": bn_bias,
            "wout": wout, "bout": bout}


if __name__ == "__main__":
    N, C, H, W = 2, 8, 16, 16
    Cout = 2
    params = make_params(C, Cout)
    x = jax.random.normal(jax.random.PRNGKey(0), (N, C, H, W), jnp.float32)

    out = jax.block_until_ready(masknet_forward(x, params))
    ref = jax.block_until_ready(masknet_reference(x, params))

    assert out.shape == (N, Cout, H, W), out.shape
    # bf16 is used for the two MXU matmuls (inference-style); tolerance reflects that.
    np.testing.assert_allclose(np.asarray(out), np.asarray(ref), rtol=3e-2, atol=3e-2)
    print("KERNEL_OK")
</pallas_src>

<mosaic_0001>
module attributes {stable_mosaic.version = 11 : i64} {
  func.func @_roll_probe_kernel(%arg0: memref<8x128xf32, #tpu.memory_space<vmem>>, %arg1: memref<8x128xf32, #tpu.memory_space<vmem>>) attributes {dimension_semantics = [], scalar_prefetch = 0 : i64, scratch_operands = 0 : i64, tpu.core_type = #tpu.core_type<tc>} {
    %c0 = arith.constant 0 : index
    %c0_0 = arith.constant 0 : index
    %0 = vector.load %arg0[%c0, %c0_0] : memref<8x128xf32, #tpu.memory_space<vmem>>, vector<8x128xf32>
    %c1_i32 = arith.constant 1 : i32
    %1 = tpu.dynamic_rotate %0 by %c1_i32 dim 1 : vector<8x128xf32>, i32 -> vector<8x128xf32>
    %c0_1 = arith.constant 0 : index
    %c0_2 = arith.constant 0 : index
    %2 = vector.load %arg1[%c0_1, %c0_2] : memref<8x128xf32, #tpu.memory_space<vmem>>, vector<8x128xf32>
    tpu.vector_store %arg1[%c0_1, %c0_2], %1 {strides = array<i32>} : memref<8x128xf32, #tpu.memory_space<vmem>>, vector<8x128xf32>,
    return
  }
}

</mosaic_0001>

<llo_original>
// kernel: tpu_custom_call.1
$region0: #{tpu_custom_call.1}
  #allocation0 [shape = 'u32[]', space=smem, size = 0x4, offset = 0x4, fixed_abs, tag = 'smem constant byte address 0x4 - core index']
  #allocation1 [shape = 'u32[144,128]{1,0:T(1,128)}', space=vmem, size = 0x12000, scoped, tag = 'internal scratch']
  %s0 = inlined_call_operand.hbm [shape: f32[8,128], index: 0, kind: input, shape index: {}]
  %s1 = inlined_call_operand.hbm [shape: f32[8,128], index: 1, kind: output, shape index: {}]
  %s2 = sld [smem:[#allocation0]]
  $region18: #{tpu_custom_call.1} parent=0
    _
  %s4 = ssub.s32 1, %s2
  %s5 = scalar_select 0, %s4, %s2
  $region1: #{tpu_custom_call.1} parent=0
    #allocation2 [shape = 'u8[4096]{0}', space=vmem, size = 0x1000, scoped, tag = 'input window, operand 0, single buffered']
    #allocation3 [shape = 's32[1]{0}', space=sflag, size = 0x4, scoped, tag = 'scoped memory for tpu_custom_call.1']
    #allocation4 [shape = 's32[1]{0}', space=sflag, size = 0x4, scoped, tag = 'scoped memory for tpu_custom_call.1']
    #allocation5 [shape = 'u8[4096]{0}', space=vmem, size = 0x1000, scoped, tag = 'output window, operand 0, single buffered']
    %6 = vsyncpa [#allocation3], 0
    %7 = vsyncpa [#allocation4], 0
    // Predicated region
    $region2: #{tpu_custom_call.1} parent=1 // pred_check
      _
    $region3: #{tpu_custom_call.1} parent=1 // pred_check_branch
      %9 = sbr.rel (0) target = $region5
    $region4: #{tpu_custom_call.1} parent=1 // pred_region
      %s11 = ssub.s32 128, 128
      %12 = vsyncadd [#allocation3], %s11
      %s14 = sshll.u32 [#allocation2], 4
      %s15 = int_to_ptr.vmem [resolvable:$true] %s14
      %17 = dma.hbm_to_vmem [thread:$0]  %s0, 128, %s15, [#allocation3]
    $region5: #{tpu_custom_call.1} parent=1 // pred_fallthru
      _
    // Predicated region
    $region6: #{tpu_custom_call.1} parent=1 // pred_check
      _
    $region7: #{tpu_custom_call.1} parent=1 // pred_check_branch
      %19 = sbr.rel (0) target = $region9
    $region8: #{tpu_custom_call.1} parent=1 // pred_region
      %20 = dma.done [#allocation3], 128
    $region9: #{tpu_custom_call.1} parent=1 // pred_fallthru
      _
    %v21 = vld [vmem:[#allocation2] sm:$0xff]
    %22 = vrot.lane.b32.xlu0 %v21, 1
    %v23 = vpop.permute.xlu0 %22
    %24 = vst [vmem:[#allocation5] sm:$0xff] %v23
    // Predicated region
    $region10: #{tpu_custom_call.1} parent=1 // pred_check
      _
    $region11: #{tpu_custom_call.1} parent=1 // pred_check_branch
      %26 = sbr.rel (0) target = $region13
    $region12: #{tpu_custom_call.1} parent=1 // pred_region
      %s28 = ssub.s32 128, 128
      %29 = vsyncadd [#allocation4], %s28
      %s31 = sshll.u32 [#allocation5], 4
      %s32 = int_to_ptr.vmem [resolvable:$true] %s31
      %34 = dma.vmem_to_hbm [thread:$0]  %s32, 128, %s1, [#allocation4]
    $region13: #{tpu_custom_call.1} parent=1 // pred_fallthru
      _
    // Predicated region
    $region14: #{tpu_custom_call.1} parent=1 // pred_check
      _
    $region15: #{tpu_custom_call.1} parent=1 // pred_check_branch
      %36 = sbr.rel (0) target = $region17
    $region16: #{tpu_custom_call.1} parent=1 // pred_region
      %37 = dma.done [#allocation4], 128
    $region17: #{tpu_custom_call.1} parent=1 // pred_fallthru
      _
    %38 = vsyncpa [#allocation3], 1
    %39 = vsyncpa [#allocation4], 1

</llo_original>
